<compile_context>
chip_gen: v7x
topology: tpu7x:2x2x1
jax: 0.10.0
libtpu: 0.0.40
codegen_flags: <defaults>
</compile_context>

<pallas_src>
import functools

import jax
import jax.numpy as jnp
from jax.experimental import pallas as pl
from jax.experimental.pallas import tpu as pltpu

LANE = 128      # TPU lane width (last dim)
SUBLANE = 8     # TPU sublane width (second-to-last dim, f32)


def _round_up(n, m):
    return ((n + m - 1) // m) * m


def _pad_to(a, shape):
    """Zero-pad trailing edges of `a` up to `shape` (exact for this math)."""
    pads = [(0, t - s) for s, t in zip(a.shape, shape)]
    if all(p == (0, 0) for p in pads):
        return a
    return jnp.pad(a, pads)


def slownet_kernel(x_ref,
                   fw1_ref, fb1_ref, fw2_ref, fb2_ref,
                   tw1_ref, tb1_ref, tw2_ref, tb2_ref,
                   fast_ref, td_ref):
    """One batch tile: fast = MLP2(x); td = MLP2(fast).

    Weights are VMEM-resident (constant index_map).  Matmuls run in the
    weights' dtype (f32 or bf16) with f32 MXU accumulation; bias + ReLU
    epilogues are f32.  `fast` never leaves vregs between the two MLPs.
    """
    cdt = fw1_ref.dtype                       # compute dtype for MXU inputs
    x = x_ref[...].astype(cdt)

    # ---- fast net: relu(x @ FW1 + fb1) @ FW2 + fb2 ----
    h = jnp.dot(x, fw1_ref[...], preferred_element_type=jnp.float32)
    h = jnp.maximum(h + fb1_ref[...], 0.0)
    fast = jnp.dot(h.astype(cdt), fw2_ref[...],
                   preferred_element_type=jnp.float32)
    fast = fast + fb2_ref[...]
    fast_ref[...] = fast.astype(fast_ref.dtype)

    # ---- top_down net, consuming the in-register fast activations ----
    g = jnp.dot(fast.astype(cdt), tw1_ref[...],
                preferred_element_type=jnp.float32)
    g = jnp.maximum(g + tb1_ref[...], 0.0)
    td = jnp.dot(g.astype(cdt), tw2_ref[...],
                 preferred_element_type=jnp.float32)
    td = td + tb2_ref[...]
    td_ref[...] = td.astype(td_ref.dtype)


def init_params(key, d_in, hidden, d_fast, d_td, dtype=jnp.float32):
    ks = jax.random.split(key, 8)

    def lin(kw, kb, fan_in, fan_out):
        bound = 1.0 / jnp.sqrt(fan_in)
        w = jax.random.uniform(kw, (fan_in, fan_out), dtype, -bound, bound)
        b = jax.random.uniform(kb, (1, fan_out), dtype, -bound, bound)
        return w, b

    fw1, fb1 = lin(ks[0], ks[1], d_in, hidden)
    fw2, fb2 = lin(ks[2], ks[3], hidden, d_fast)
    tw1, tb1 = lin(ks[4], ks[5], d_fast, hidden)
    tw2, tb2 = lin(ks[6], ks[7], hidden, d_td)
    return {"fast": (fw1, fb1, fw2, fb2), "top_down": (tw1, tb1, tw2, tb2)}


def pad_params(params, *, use_bf16=False):
    """Pre-pad (and optionally bf16-cast) all parameters ONCE, off the hot path.

    Weights -> multiples of 128 lanes (zero pad is exact); biases stay f32 for
    the f32 epilogue.  Returns (padded_param_tuple, true_dims_dict).
    """
    fw1, fb1, fw2, fb2 = params["fast"]
    tw1, tb1, tw2, tb2 = params["top_down"]

    d_in, hidden = fw1.shape
    d_fast = fw2.shape[1]
    d_td = tw2.shape[1]

    d_in_p = _round_up(d_in, LANE)
    hidden_p = _round_up(hidden, LANE)
    d_fast_p = _round_up(d_fast, LANE)
    d_td_p = _round_up(d_td, LANE)

    wdt = jnp.bfloat16 if use_bf16 else jnp.float32
    padded = (
        _pad_to(fw1, (d_in_p, hidden_p)).astype(wdt),
        _pad_to(fb1, (1, hidden_p)).astype(jnp.float32),
        _pad_to(fw2, (hidden_p, d_fast_p)).astype(wdt),
        _pad_to(fb2, (1, d_fast_p)).astype(jnp.float32),
        _pad_to(tw1, (d_fast_p, hidden_p)).astype(wdt),
        _pad_to(tb1, (1, hidden_p)).astype(jnp.float32),
        _pad_to(tw2, (hidden_p, d_td_p)).astype(wdt),
        _pad_to(tb2, (1, d_td_p)).astype(jnp.float32),
    )
    dims = {"d_in": d_in, "hidden": hidden, "d_fast": d_fast, "d_td": d_td}
    return padded, dims


def slownet_forward(padded_params, x, *, d_fast, d_td, block_b=256):
    """SlowNet.forward on pre-padded params: one pallas_call, batch-tiled grid."""
    fw1p, fb1p, fw2p, fb2p, tw1p, tb1p, tw2p, tb2p = padded_params
    B, _ = x.shape
    d_in_p, hidden_p = fw1p.shape
    d_fast_p = fw2p.shape[1]
    d_td_p = tw2p.shape[1]
    out_dtype = x.dtype
    itemsize = jnp.dtype(out_dtype).itemsize

    # Batch tile: multiple of 8 sublanes, moderate size (128-512 at real sizes)
    # so the live intermediates (x, h, fast, g, td) stay small in VMEM.
    tb = max(SUBLANE, _round_up(min(block_b, B), SUBLANE))
    Bp = _round_up(B, tb)
    n_tiles = Bp // tb

    # Only x is padded per call; weights were pre-padded in pad_params().
    xp = _pad_to(x, (Bp, d_in_p))

    def resident(shape):  # weights/biases: DMA'd once, VMEM-resident across tiles
        return pl.BlockSpec(shape, lambda i: (0, 0))

    in_specs = [pl.BlockSpec((tb, d_in_p), lambda i: (i, 0))]
    in_specs += [resident(w.shape) for w in padded_params]
    out_specs = (pl.BlockSpec((tb, d_fast_p), lambda i: (i, 0)),
                 pl.BlockSpec((tb, d_td_p), lambda i: (i, 0)))

    # Cost estimate: weights counted once (resident), x/outputs per element.
    flops = 2 * Bp * (d_in_p * hidden_p + hidden_p * d_fast_p
                      + d_fast_p * hidden_p + hidden_p * d_td_p)
    weight_bytes = sum(int(w.size) * jnp.dtype(w.dtype).itemsize
                       for w in padded_params)
    bytes_accessed = (weight_bytes
                      + (Bp * d_in_p + Bp * d_fast_p + Bp * d_td_p) * itemsize)

    # VMEM budget: resident weights + double-buffered tile I/O + f32 intermediates,
    # with 2x headroom, capped at 48 MiB so it also fits v7x's 64 MiB VMEM.
    per_tile_io = 2 * tb * (d_in_p + d_fast_p + d_td_p) * itemsize
    intermediates = tb * (2 * hidden_p + d_fast_p + d_td_p) * 4
    needed = weight_bytes + per_tile_io + intermediates
    vmem_limit = int(min(max(2 * needed, 8 * 1024 * 1024), 48 * 1024 * 1024))

    fast_p, td_p = pl.pallas_call(
        slownet_kernel,
        out_shape=(jax.ShapeDtypeStruct((Bp, d_fast_p), out_dtype),
                   jax.ShapeDtypeStruct((Bp, d_td_p), out_dtype)),
        grid=(n_tiles,),
        in_specs=in_specs,
        out_specs=out_specs,
        cost_estimate=pl.CostEstimate(flops=flops, transcendentals=0,
                                      bytes_accessed=bytes_accessed),
        compiler_params=pltpu.CompilerParams(
            dimension_semantics=("parallel",),   # v7x: shard batch across 2 TCs
            vmem_limit_bytes=vmem_limit),
    )(xp, *padded_params)

    # Slice padded outputs back to the true SlowNet output shapes.
    return fast_p[:B, :d_fast], td_p[:B, :d_td]


if __name__ == "__main__":
    # Small shapes consistent with a 2-layer-MLP SlowNet.
    B, D_IN, HIDDEN, D_FAST, D_TD = 8, 64, 32, 32, 16

    key = jax.random.PRNGKey(0)
    k_x, k_p = jax.random.split(key)
    x = jax.random.normal(k_x, (B, D_IN), jnp.float32)
    params = init_params(k_p, D_IN, HIDDEN, D_FAST, D_TD)

    # Pure-JAX reference (SlowNet.forward semantics).
    fw1, fb1, fw2, fb2 = params["fast"]
    tw1, tb1, tw2, tb2 = params["top_down"]
    ref_fast = jnp.maximum(x @ fw1 + fb1, 0.0) @ fw2 + fb2
    ref_td = jnp.maximum(ref_fast @ tw1 + tb1, 0.0) @ tw2 + tb2

    # ---- default f32 path: exact vs. reference ----
    padded_f32, dims = pad_params(params, use_bf16=False)
    fwd = jax.jit(functools.partial(slownet_forward,
                                    d_fast=dims["d_fast"], d_td=dims["d_td"],
                                    block_b=256))
    out_fast, out_td = fwd(padded_f32, x)
    jax.block_until_ready((out_fast, out_td))
    assert out_fast.shape == (B, D_FAST)
    assert out_td.shape == (B, D_TD)
    assert jnp.allclose(out_fast, ref_fast, atol=1e-5, rtol=1e-5)
    assert jnp.allclose(out_td, ref_td, atol=1e-5, rtol=1e-5)

    # ---- bf16 weight path (MXU fast path on v6e/v7x): relaxed tolerance ----
    padded_bf16, _ = pad_params(params, use_bf16=True)
    bf_fast, bf_td = fwd(padded_bf16, x)
    jax.block_until_ready((bf_fast, bf_td))
    assert jnp.allclose(bf_fast, ref_fast, atol=5e-2, rtol=5e-2)
    assert jnp.allclose(bf_td, ref_td, atol=5e-2, rtol=5e-2)

    # TODO(synk): freeze_fast / unfreeze_fast are training-time requires_grad
    # toggles with no forward-pass / Pallas equivalent.
    print("KERNEL_OK")
</pallas_src>

<mosaic_0001>
module attributes {stable_mosaic.version = 11 : i64} {
  func.func @slownet_kernel(%arg0: i32, %arg1: memref<8x128xf32, #tpu.memory_space<vmem>>, %arg2: memref<128x128xf32, #tpu.memory_space<vmem>>, %arg3: memref<1x128xf32, #tpu.memory_space<vmem>>, %arg4: memref<128x128xf32, #tpu.memory_space<vmem>>, %arg5: memref<1x128xf32, #tpu.memory_space<vmem>>, %arg6: memref<128x128xf32, #tpu.memory_space<vmem>>, %arg7: memref<1x128xf32, #tpu.memory_space<vmem>>, %arg8: memref<128x128xf32, #tpu.memory_space<vmem>>, %arg9: memref<1x128xf32, #tpu.memory_space<vmem>>, %arg10: memref<8x128xf32, #tpu.memory_space<vmem>>, %arg11: memref<8x128xf32, #tpu.memory_space<vmem>>) attributes {dimension_semantics = [#tpu.dimension_semantics<parallel>], iteration_bounds = array<i64: 1>, scalar_prefetch = 0 : i64, scratch_operands = 0 : i64, tpu.core_type = #tpu.core_type<tc>, window_params = [{transform_indices = @transform_0, window_bounds = array<i64: 8, 128>}, {pipeline_mode = #tpu.pipeline_mode<synchronous>, transform_indices = @transform_1, window_bounds = array<i64: 128, 128>}, {pipeline_mode = #tpu.pipeline_mode<synchronous>, transform_indices = @transform_2, window_bounds = array<i64: 1, 128>}, {pipeline_mode = #tpu.pipeline_mode<synchronous>, transform_indices = @transform_3, window_bounds = array<i64: 128, 128>}, {pipeline_mode = #tpu.pipeline_mode<synchronous>, transform_indices = @transform_4, window_bounds = array<i64: 1, 128>}, {pipeline_mode = #tpu.pipeline_mode<synchronous>, transform_indices = @transform_5, window_bounds = array<i64: 128, 128>}, {pipeline_mode = #tpu.pipeline_mode<synchronous>, transform_indices = @transform_6, window_bounds = array<i64: 1, 128>}, {pipeline_mode = #tpu.pipeline_mode<synchronous>, transform_indices = @transform_7, window_bounds = array<i64: 128, 128>}, {pipeline_mode = #tpu.pipeline_mode<synchronous>, transform_indices = @transform_8, window_bounds = array<i64: 1, 128>}, {transform_indices = @transform_9, window_bounds = array<i64: 8, 128>}, {transform_indices = @transform_10, window_bounds = array<i64: 8, 128>}]} {
    %c0 = arith.constant 0 : index
    %c0_0 = arith.constant 0 : index
    %0 = vector.load %arg1[%c0, %c0_0] : memref<8x128xf32, #tpu.memory_space<vmem>>, vector<8x128xf32>
    %c0_1 = arith.constant 0 : index
    %c0_2 = arith.constant 0 : index
    %1 = vector.load %arg2[%c0_1, %c0_2] : memref<128x128xf32, #tpu.memory_space<vmem>>, vector<128x128xf32>
    %cst = arith.constant dense<0.000000e+00> : vector<8x128xf32>
    %2 = tpu.matmul %0, %1, %cst {dimension_numbers = #tpu.dot_dimension_numbers<[1], [0], [0], [1], [0, 0, 1, 1], [], []>} : vector<8x128xf32>, vector<128x128xf32>, vector<8x128xf32> -> vector<8x128xf32>
    %c0_3 = arith.constant 0 : index
    %c0_4 = arith.constant 0 : index
    %3 = vector.load %arg3[%c0_3, %c0_4] : memref<1x128xf32, #tpu.memory_space<vmem>>, vector<1x128xf32>
    %4 = vector.broadcast %3 : vector<1x128xf32> to vector<8x128xf32>
    %5 = arith.addf %2, %4 : vector<8x128xf32>
    %cst_5 = arith.constant 0.000000e+00 : f32
    %6 = vector.broadcast %cst_5 : f32 to vector<8x128xf32>
    %7 = arith.maximumf %5, %6 : vector<8x128xf32>
    %c0_6 = arith.constant 0 : index
    %c0_7 = arith.constant 0 : index
    %8 = vector.load %arg4[%c0_6, %c0_7] : memref<128x128xf32, #tpu.memory_space<vmem>>, vector<128x128xf32>
    %cst_8 = arith.constant dense<0.000000e+00> : vector<8x128xf32>
    %9 = tpu.matmul %7, %8, %cst_8 {dimension_numbers = #tpu.dot_dimension_numbers<[1], [0], [0], [1], [0, 0, 1, 1], [], []>} : vector<8x128xf32>, vector<128x128xf32>, vector<8x128xf32> -> vector<8x128xf32>
    %c0_9 = arith.constant 0 : index
    %c0_10 = arith.constant 0 : index
    %10 = vector.load %arg5[%c0_9, %c0_10] : memref<1x128xf32, #tpu.memory_space<vmem>>, vector<1x128xf32>
    %11 = vector.broadcast %10 : vector<1x128xf32> to vector<8x128xf32>
    %12 = arith.addf %9, %11 : vector<8x128xf32>
    %c0_11 = arith.constant 0 : index
    %c0_12 = arith.constant 0 : index
    %13 = vector.load %arg10[%c0_11, %c0_12] : memref<8x128xf32, #tpu.memory_space<vmem>>, vector<8x128xf32>
    tpu.vector_store %arg10[%c0_11, %c0_12], %12 {strides = array<i32>} : memref<8x128xf32, #tpu.memory_space<vmem>>, vector<8x128xf32>,
    %c0_13 = arith.constant 0 : index
    %c0_14 = arith.constant 0 : index
    %14 = vector.load %arg6[%c0_13, %c0_14] : memref<128x128xf32, #tpu.memory_space<vmem>>, vector<128x128xf32>
    %cst_15 = arith.constant dense<0.000000e+00> : vector<8x128xf32>
    %15 = tpu.matmul %12, %14, %cst_15 {dimension_numbers = #tpu.dot_dimension_numbers<[1], [0], [0], [1], [0, 0, 1, 1], [], []>} : vector<8x128xf32>, vector<128x128xf32>, vector<8x128xf32> -> vector<8x128xf32>
    %c0_16 = arith.constant 0 : index
    %c0_17 = arith.constant 0 : index
    %16 = vector.load %arg7[%c0_16, %c0_17] : memref<1x128xf32, #tpu.memory_space<vmem>>, vector<1x128xf32>
    %17 = vector.broadcast %16 : vector<1x128xf32> to vector<8x128xf32>
    %18 = arith.addf %15, %17 : vector<8x128xf32>
    %cst_18 = arith.constant 0.000000e+00 : f32
    %19 = vector.broadcast %cst_18 : f32 to vector<8x128xf32>
    %20 = arith.maximumf %18, %19 : vector<8x128xf32>
    %c0_19 = arith.constant 0 : index
    %c0_20 = arith.constant 0 : index
    %21 = vector.load %arg8[%c0_19, %c0_20] : memref<128x128xf32, #tpu.memory_space<vmem>>, vector<128x128xf32>
    %cst_21 = arith.constant dense<0.000000e+00> : vector<8x128xf32>
    %22 = tpu.matmul %20, %21, %cst_21 {dimension_numbers = #tpu.dot_dimension_numbers<[1], [0], [0], [1], [0, 0, 1, 1], [], []>} : vector<8x128xf32>, vector<128x128xf32>, vector<8x128xf32> -> vector<8x128xf32>
    %c0_22 = arith.constant 0 : index
    %c0_23 = arith.constant 0 : index
    %23 = vector.load %arg9[%c0_22, %c0_23] : memref<1x128xf32, #tpu.memory_space<vmem>>, vector<1x128xf32>
    %24 = vector.broadcast %23 : vector<1x128xf32> to vector<8x128xf32>
    %25 = arith.addf %22, %24 : vector<8x128xf32>
    %c0_24 = arith.constant 0 : index
    %c0_25 = arith.constant 0 : index
    %26 = vector.load %arg11[%c0_24, %c0_25] : memref<8x128xf32, #tpu.memory_space<vmem>>, vector<8x128xf32>
    tpu.vector_store %arg11[%c0_24, %c0_25], %25 {strides = array<i32>} : memref<8x128xf32, #tpu.memory_space<vmem>>, vector<8x128xf32>,
    return
  }
  func.func @transform_0(%arg0: i32) -> (i32, i32) {
    %c0_i32 = arith.constant 0 : i32
    %c0_i32_0 = arith.constant 0 : i32
    return %arg0, %c0_i32 : i32, i32
  }
  func.func @transform_1(%arg0: i32) -> (i32, i32) {
    %c0_i32 = arith.constant 0 : i32
    %c0_i32_0 = arith.constant 0 : i32
    %c0_i32_1 = arith.constant 0 : i32
    return %c0_i32, %c0_i32_0 : i32, i32
  }
  func.func @transform_2(%arg0: i32) -> (i32, i32) {
    %c0_i32 = arith.constant 0 : i32
    %c0_i32_0 = arith.constant 0 : i32
    %c0_i32_1 = arith.constant 0 : i32
    return %c0_i32, %c0_i32_0 : i32, i32
  }
  func.func @transform_3(%arg0: i32) -> (i32, i32) {
    %c0_i32 = arith.constant 0 : i32
    %c0_i32_0 = arith.constant 0 : i32
    %c0_i32_1 = arith.constant 0 : i32
    return %c0_i32, %c0_i32_0 : i32, i32
  }
  func.func @transform_4(%arg0: i32) -> (i32, i32) {
    %c0_i32 = arith.constant 0 : i32
    %c0_i32_0 = arith.constant 0 : i32
    %c0_i32_1 = arith.constant 0 : i32
    return %c0_i32, %c0_i32_0 : i32, i32
  }
  func.func @transform_5(%arg0: i32) -> (i32, i32) {
    %c0_i32 = arith.constant 0 : i32
    %c0_i32_0 = arith.constant 0 : i32
    %c0_i32_1 = arith.constant 0 : i32
    return %c0_i32, %c0_i32_0 : i32, i32
  }
  func.func @transform_6(%arg0: i32) -> (i32, i32) {
    %c0_i32 = arith.constant 0 : i32
    %c0_i32_0 = arith.constant 0 : i32
    %c0_i32_1 = arith.constant 0 : i32
    return %c0_i32, %c0_i32_0 : i32, i32
  }
  func.func @transform_7(%arg0: i32) -> (i32, i32) {
    %c0_i32 = arith.constant 0 : i32
    %c0_i32_0 = arith.constant 0 : i32
    %c0_i32_1 = arith.constant 0 : i32
    return %c0_i32, %c0_i32_0 : i32, i32
  }
  func.func @transform_8(%arg0: i32) -> (i32, i32) {
    %c0_i32 = arith.constant 0 : i32
    %c0_i32_0 = arith.constant 0 : i32
    %c0_i32_1 = arith.constant 0 : i32
    return %c0_i32, %c0_i32_0 : i32, i32
  }
  func.func @transform_9(%arg0: i32) -> (i32, i32) {
    %c0_i32 = arith.constant 0 : i32
    %c0_i32_0 = arith.constant 0 : i32
    return %arg0, %c0_i32 : i32, i32
  }
  func.func @transform_10(%arg0: i32) -> (i32, i32) {
    %c0_i32 = arith.constant 0 : i32
    %c0_i32_0 = arith.constant 0 : i32
    return %arg0, %c0_i32 : i32, i32
  }
}

</mosaic_0001>

<llo_original>
// kernel: slownet_forward.1
$region0: #{slownet_forward.1}
  #allocation0 [shape = 'u32[]', space=smem, size = 0x4, offset = 0x4, fixed_abs, tag = 'smem constant byte address 0x4 - core index']
  #allocation1 [shape = 'u32[144,128]{1,0:T(1,128)}', space=vmem, size = 0x12000, scoped, tag = 'internal scratch']
  %s0 = inlined_call_operand.vmem [shape: f32[8,128], index: 0, kind: input, shape index: {}]
  %s1 = inlined_call_operand.hbm [shape: f32[128,128], index: 1, kind: input, shape index: {}]
  %s2 = inlined_call_operand.vmem [shape: f32[1,128], index: 2, kind: input, shape index: {}]
  %s3 = inlined_call_operand.hbm [shape: f32[128,128], index: 3, kind: input, shape index: {}]
  %s4 = inlined_call_operand.vmem [shape: f32[1,128], index: 4, kind: input, shape index: {}]
  %s5 = inlined_call_operand.hbm [shape: f32[128,128], index: 5, kind: input, shape index: {}]
  %s6 = inlined_call_operand.vmem [shape: f32[1,128], index: 6, kind: input, shape index: {}]
  %s7 = inlined_call_operand.hbm [shape: f32[128,128], index: 7, kind: input, shape index: {}]
  %s8 = inlined_call_operand.vmem [shape: f32[1,128], index: 8, kind: input, shape index: {}]
  %s9 = inlined_call_operand.hbm [shape: f32[8,128], index: 9, kind: output, shape index: {0}]
  %s10 = inlined_call_operand.hbm [shape: f32[8,128], index: 10, kind: output, shape index: {1}]
  %11 = xla_tuple %s9, %s10
  %s12 = sld [smem:[#allocation0]]
  $region70: #{slownet_forward.1} parent=0
    _
  %s14 = ssub.s32 1, %s12
  %s15 = scalar_select 0, %s14, %s12
  $region1: #{slownet_forward.1} parent=0
    #allocation2 [shape = 'u8[65536]{0}', space=vmem, size = 0x10000, scoped, tag = 'input window, operand 1, single buffered']
    #allocation3 [shape = 's32[1]{0}', space=sflag, size = 0x4, scoped, tag = 'scoped memory for slownet_forward.1']
    #allocation4 [shape = 's32[1]{0}', space=sflag, size = 0x4, scoped, tag = 'scoped memory for slownet_forward.1']
    #allocation5 [shape = 'u8[65536]{0}', space=vmem, size = 0x10000, scoped, tag = 'input window, operand 3, single buffered']
    #allocation6 [shape = 's32[1]{0}', space=sflag, size = 0x4, scoped, tag = 'scoped memory for slownet_forward.1']
    #allocation7 [shape = 'u8[65536]{0}', space=vmem, size = 0x10000, scoped, tag = 'input window, operand 5, single buffered']
    #allocation8 [shape = 'u8[65536]{0}', space=vmem, size = 0x10000, scoped, tag = 'input window, operand 7, single buffered']
    #allocation9 [shape = 's32[1]{0}', space=sflag, size = 0x4, scoped, tag = 'scoped memory for slownet_forward.1']
    #allocation10 [shape = 'u8[4096]{0}', space=vmem, size = 0x1000, scoped, tag = 'output window, operand 0, single buffered']
    #allocation11 [shape = 'u8[4096]{0}', space=vmem, size = 0x1000, scoped, tag = 'output window, operand 1, single buffered']
    #allocation12 [shape = 's32[1]{0}', space=sflag, size = 0x4, scoped, tag = 'scoped memory for slownet_forward.1']
    %16 = vsyncpa [#allocation3], 0
    %17 = vsyncpa [#allocation6], 0
    %18 = vsyncpa [#allocation9], 0
    %19 = vsyncpa [#allocation4], 0
    %20 = vsyncpa [#allocation12], 0
    // Predicated region
    $region2: #{slownet_forward.1} parent=1 // pred_check
      _
    $region3: #{slownet_forward.1} parent=1 // pred_check_branch
      %22 = sbr.rel (0) target = $region5
    $region4: #{slownet_forward.1} parent=1 // pred_region
      _
    $region5: #{slownet_forward.1} parent=1 // pred_fallthru
      _
    // Predicated region
    $region6: #{slownet_forward.1} parent=1 // pred_check
      _
    $region7: #{slownet_forward.1} parent=1 // pred_check_branch
      %24 = sbr.rel (0) target = $region9
    $region8: #{slownet_forward.1} parent=1 // pred_region
      %s26 = ssub.s32 2048, 2048
      %27 = vsyncadd [#allocation3], %s26
      %s28 = sshll.u32 [#allocation2], 4
      %s29 = int_to_ptr.vmem [resolvable:$true] %s28
      %34 = dma.hbm_to_vmem [thread:$0]  %s1, 2048, %s29, [#allocation3], 128, 128, 8
    $region9: #{slownet_forward.1} parent=1 // pred_fallthru
      _
    // Predicated region
    $region10: #{slownet_forward.1} parent=1 // pred_check
      _
    $region11: #{slownet_forward.1} parent=1 // pred_check_branch
      %36 = sbr.rel (0) target = $region13
    $region12: #{slownet_forward.1} parent=1 // pred_region
      _
    $region13: #{slownet_forward.1} parent=1 // pred_fallthru
      _
    // Predicated region
    $region14: #{slownet_forward.1} parent=1 // pred_check
      _
    $region15: #{slownet_forward.1} parent=1 // pred_check_branch
      %38 = sbr.rel (0) target = $region17
    $region16: #{slownet_forward.1} parent=1 // pred_region
      %s40 = ssub.s32 2048, 2048
      %41 = vsyncadd [#allocation6], %s40
      %s42 = sshll.u32 [#allocation5], 4
      %s43 = int_to_ptr.vmem [resolvable:$true] %s42
      %48 = dma.hbm_to_vmem [thread:$0]  %s3, 2048, %s43, [#allocation6], 128, 128, 8
    $region17: #{slownet_forward.1} parent=1 // pred_fallthru
      _
    // Predicated region
    $region18: #{slownet_forward.1} parent=1 // pred_check
      _
    $region19: #{slownet_forward.1} parent=1 // pred_check_branch
      %50 = sbr.rel (0) target = $region21
    $region20: #{slownet_forward.1} parent=1 // pred_region
      _
    $region21: #{slownet_forward.1} parent=1 // pred_fallthru
      _
    // Predicated region
    $region22: #{slownet_forward.1} parent=1 // pred_check
      _
    $region23: #{slownet_forward.1} parent=1 // pred_check_branch
      %52 = sbr.rel (0) target = $region25
    $region24: #{slownet_forward.1} parent=1 // pred_region
      %s54 = ssub.s32 2048, 2048
      %55 = vsyncadd [#allocation6], %s54
      %s56 = sshll.u32 [#allocation7], 4
      %s57 = int_to_ptr.vmem [resolvable:$true] %s56
      %62 = dma.hbm_to_vmem [thread:$0]  %s5, 2048, %s57, [#allocation6], 128, 128, 8
    $region25: #{slownet_forward.1} parent=1 // pred_fallthru
      _
    // Predicated region
    $region26: #{slownet_forward.1} parent=1 // pred_check
      _
    $region27: #{slownet_forward.1} parent=1 // pred_check_branch
      %64 = sbr.rel (0) target = $region29
    $region28: #{slownet_forward.1} parent=1 // pred_region
      _
    $region29: #{slownet_forward.1} parent=1 // pred_fallthru
      _
    // Predicated region
    $region30: #{slownet_forward.1} parent=1 // pred_check
      _
    $region31: #{slownet_forward.1} parent=1 // pred_check_branch
      %66 = sbr.rel (0) target = $region33
    $region32: #{slownet_forward.1} parent=1 // pred_region
      %s68 = ssub.s32 2048, 2048
      %69 = vsyncadd [#allocation9], %s68
      %s70 = sshll.u32 [#allocation8], 4
      %s71 = int_to_ptr.vmem [resolvable:$true] %s70
      %76 = dma.hbm_to_vmem [thread:$0]  %s7, 2048, %s71, [#allocation9], 128, 128, 8
    $region33: #{slownet_forward.1} parent=1 // pred_fallthru
      _
    // Predicated region
    $region34: #{slownet_forward.1} parent=1 // pred_check
      _
    $region35: #{slownet_forward.1} parent=1 // pred_check_branch
      %78 = sbr.rel (0) target = $region37
    $region36: #{slownet_forward.1} parent=1 // pred_region
      _
    $region37: #{slownet_forward.1} parent=1 // pred_fallthru
      _
    // Predicated region
    $region38: #{slownet_forward.1} parent=1 // pred_check
      _
    $region39: #{slownet_forward.1} parent=1 // pred_check_branch
      %80 = sbr.rel (0) target = $region41
    $region40: #{slownet_forward.1} parent=1 // pred_region
      %81 = dma.done [#allocation3], 2048
    $region41: #{slownet_forward.1} parent=1 // pred_fallthru
      _
    // Predicated region
    $region42: #{slownet_forward.1} parent=1 // pred_check
      _
    $region43: #{slownet_forward.1} parent=1 // pred_check_branch
      %83 = sbr.rel (0) target = $region45
    $region44: #{slownet_forward.1} parent=1 // pred_region
      %84 = dma.done [#allocation6], 2048
    $region45: #{slownet_forward.1} parent=1 // pred_fallthru
      _
    // Predicated region
    $region46: #{slownet_forward.1} parent=1 // pred_check
      _
    $region47: #{slownet_forward.1} parent=1 // pred_check_branch
      %86 = sbr.rel (0) target = $region49
    $region48: #{slownet_forward.1} parent=1 // pred_region
      %87 = dma.done [#allocation6], 2048
    $region49: #{slownet_forward.1} parent=1 // pred_fallthru
      _
    // Predicated region
    $region50: #{slownet_forward.1} parent=1 // pred_check
      _
    $region51: #{slownet_forward.1} parent=1 // pred_check_branch
      %89 = sbr.rel (0) target = $region53
    $region52: #{slownet_forward.1} parent=1 // pred_region
      %90 = dma.done [#allocation9], 2048
    $region53: #{slownet_forward.1} parent=1 // pred_fallthru
      _
    %v91 = vld [vmem:[%s0] sm:$0xff]
    %v92 = vld [vmem:[#allocation2] sm:$0xff]
    %v93 = vld [vmem:[#allocation2 + $0x8] sm:$0xff]
    %v94 = vld [vmem:[#allocation2 + $0x10] sm:$0xff]
    %v95 = vld [vmem:[#allocation2 + $0x18] sm:$0xff]
    %v96 = vld [vmem:[#allocation2 + $0x20] sm:$0xff]
    %v97 = vld [vmem:[#allocation2 + $0x28] sm:$0xff]
    %v98 = vld [vmem:[#allocation2 + $0x30] sm:$0xff]
    %v99 = vld [vmem:[#allocation2 + $0x38] sm:$0xff]
    %v100 = vld [vmem:[#allocation2 + $0x40] sm:$0xff]
    %v101 = vld [vmem:[#allocation2 + $0x48] sm:$0xff]
    %v102 = vld [vmem:[#allocation2 + $0x50] sm:$0xff]
    %v103 = vld [vmem:[#allocation2 + $0x58] sm:$0xff]
    %v104 = vld [vmem:[#allocation2 + $0x60] sm:$0xff]
    %v105 = vld [vmem:[#allocation2 + $0x68] sm:$0xff]
    %v106 = vld [vmem:[#allocation2 + $0x70] sm:$0xff]
    %v107 = vld [vmem:[#allocation2 + $0x78] sm:$0xff]
    %v108 = vld [vmem:[%s2] sm:$0x1]
    %v110 = vlaneseq
    %v111 = vshrl.u32 %v110, 7
    %v112 = vsub.s32 0, %v111
    %v113 = vrot.slane %v108, %v112
    %115 = vmatprep.subr.mxu0 0.0
    %116 = vmatpush1.msra.mxu0 %v92
    %117 = vmatprep.subr.mxu0 0.0
    %118 = vmatpush1.msra.mxu0 %v93
    %119 = vmatprep.subr.mxu0 0.0
    %120 = vmatpush1.msra.mxu0 %v94
    %121 = vmatprep.subr.mxu0 0.0
    %122 = vmatpush1.msra.mxu0 %v95
    %123 = vmatprep.subr.mxu0 0.0
    %124 = vmatpush1.msra.mxu0 %v96
    %125 = vmatprep.subr.mxu0 0.0
    %126 = vmatpush1.msra.mxu0 %v97
    %127 = vmatprep.subr.mxu0 0.0
    %128 = vmatpush1.msra.mxu0 %v98
    %129 = vmatprep.subr.mxu0 0.0
    %130 = vmatpush1.msra.mxu0 %v99
    %131 = vmatprep.subr.mxu0 0.0
    %132 = vmatpush1.msra.mxu0 %v100
    %133 = vmatprep.subr.mxu0 0.0
    %134 = vmatpush1.msra.mxu0 %v101
    %135 = vmatprep.subr.mxu0 0.0
    %136 = vmatpush1.msra.mxu0 %v102
    %137 = vmatprep.subr.mxu0 0.0
    %138 = vmatpush1.msra.mxu0 %v103
    %139 = vmatprep.subr.mxu0 0.0
    %140 = vmatpush1.msra.mxu0 %v104
    %141 = vmatprep.subr.mxu0 0.0
    %142 = vmatpush1.msra.mxu0 %v105
    %143 = vmatprep.subr.mxu0 0.0
    %144 = vmatpush1.msra.mxu0 %v106
    %145 = vmatprep.subr.mxu0 0.0
    %146 = vmatpush1.msra.mxu0 %v107
    %147 = vmatprep.subr.mxu0 0.0
    %148 = vmatpush1.msra.mxu0 0.0
    %149 = vmatprep.subr.mxu0 0.0
    %150 = vmatpush1.msra.mxu0 0.0
    %151 = vmatprep.subr.mxu0 0.0
    %152 = vmatpush1.msra.mxu0 0.0
    %153 = vmatprep.subr.mxu0 0.0
    %154 = vmatpush1.msra.mxu0 0.0
    %155 = vmatprep.subr.mxu0 0.0
    %156 = vmatpush1.msra.mxu0 0.0
    %157 = vmatprep.subr.mxu0 0.0
    %158 = vmatpush1.msra.mxu0 0.0
    %159 = vmatprep.subr.mxu0 0.0
    %160 = vmatpush1.msra.mxu0 0.0
    %161 = vmatprep.subr.mxu0 0.0
    %162 = vmatpush1.msra.mxu0 0.0
    %163 = vmatprep.subr.mxu0 0.0
    %164 = vmatpush1.msra.mxu0 0.0
    %165 = vmatprep.subr.mxu0 0.0
    %166 = vmatpush1.msra.mxu0 0.0
    %167 = vmatprep.subr.mxu0 0.0
    %168 = vmatpush1.msra.mxu0 0.0
    %169 = vmatprep.subr.mxu0 0.0
    %170 = vmatpush1.msra.mxu0 0.0
    %171 = vmatprep.subr.mxu0 0.0
    %172 = vmatpush1.msra.mxu0 0.0
    %173 = vmatprep.subr.mxu0 0.0
    %174 = vmatpush1.msra.mxu0 0.0
    %175 = vmatprep.subr.mxu0 0.0
    %176 = vmatpush1.msra.mxu0 0.0
    %177 = vmatprep.subr.mxu0 0.0
    %178 = vmatpush1.msra.mxu0 0.0
    %179 = vmatprep.mubr.f32.mxu0 0.0
    %180 = vmatmul.mubr.f32.gmra.mrb[0].mxu0 %v91
    %v181 = vpop.f32.mrb[0].mxu0
    %v182 = vadd.f32 %v113, %v181
    %v183 = vpop.f32.mrb[0].mxu0
    %184 = vdwg.mxu0
    %v185 = vmax.f32 %v182, 0.0
    %v186 = vld [vmem:[#allocation5] sm:$0xff]
    %v187 = vld [vmem:[#allocation5 + $0x8] sm:$0xff]
    %v188 = vld [vmem:[#allocation5 + $0x10] sm:$0xff]
    %v189 = vld [vmem:[#allocation5 + $0x18] sm:$0xff]
    %v190 = vld [vmem:[#allocation5 + $0x20] sm:$0xff]
    %v191 = vld [vmem:[#allocation5 + $0x28] sm:$0xff]
    %v192 = vld [vmem:[#allocation5 + $0x30] sm:$0xff]
    %v193 = vld [vmem:[#allocation5 + $0x38] sm:$0xff]
    %v194 = vld [vmem:[#allocation5 + $0x40] sm:$0xff]
    %v195 = vld [vmem:[#allocation5 + $0x48] sm:$0xff]
    %v196 = vld [vmem:[#allocation5 + $0x50] sm:$0xff]
    %v197 = vld [vmem:[#allocation5 + $0x58] sm:$0xff]
    %v198 = vld [vmem:[#allocation5 + $0x60] sm:$0xff]
    %v199 = vld [vmem:[#allocation5 + $0x68] sm:$0xff]
    %v200 = vld [vmem:[#allocation5 + $0x70] sm:$0xff]
    %v201 = vld [vmem:[#allocation5 + $0x78] sm:$0xff]
    %v202 = vld [vmem:[%s4] sm:$0x1]
    %v204 = vlaneseq
    %v205 = vshrl.u32 %v204, 7
    %v206 = vsub.s32 0, %v205
    %v207 = vrot.slane %v202, %v206
    %209 = vmatprep.subr.mxu0 0.0
    %210 = vmatpush1.msra.mxu0 %v186
    %211 = vmatprep.subr.mxu0 0.0
    %212 = vmatpush1.msra.mxu0 %v187
    %213 = vmatprep.subr.mxu0 0.0
    %214 = vmatpush1.msra.mxu0 %v188
    %215 = vmatprep.subr.mxu0 0.0
    %216 = vmatpush1.msra.mxu0 %v189
    %217 = vmatprep.subr.mxu0 0.0
    %218 = vmatpush1.msra.mxu0 %v190
    %219 = vmatprep.subr.mxu0 0.0
    %220 = vmatpush1.msra.mxu0 %v191
    %221 = vmatprep.subr.mxu0 0.0
    %222 = vmatpush1.msra.mxu0 %v192
    %223 = vmatprep.subr.mxu0 0.0
    %224 = vmatpush1.msra.mxu0 %v193
    %225 = vmatprep.subr.mxu0 0.0
    %226 = vmatpush1.msra.mxu0 %v194
    %227 = vmatprep.subr.mxu0 0.0
    %228 = vmatpush1.msra.mxu0 %v195
    %229 = vmatprep.subr.mxu0 0.0
    %230 = vmatpush1.msra.mxu0 %v196
    %231 = vmatprep.subr.mxu0 0.0
    %232 = vmatpush1.msra.mxu0 %v197
    %233 = vmatprep.subr.mxu0 0.0
    %234 = vmatpush1.msra.mxu0 %v198
    %235 = vmatprep.subr.mxu0 0.0
    %236 = vmatpush1.msra.mxu0 %v199
    %237 = vmatprep.subr.mxu0 0.0
    %238 = vmatpush1.msra.mxu0 %v200
    %239 = vmatprep.subr.mxu0 0.0
    %240 = vmatpush1.msra.mxu0 %v201
    %241 = vmatprep.subr.mxu0 0.0
    %242 = vmatpush1.msra.mxu0 0.0
    %243 = vmatprep.subr.mxu0 0.0
    %244 = vmatpush1.msra.mxu0 0.0
    %245 = vmatprep.subr.mxu0 0.0
    %246 = vmatpush1.msra.mxu0 0.0
    %247 = vmatprep.subr.mxu0 0.0
    %248 = vmatpush1.msra.mxu0 0.0
    %249 = vmatprep.subr.mxu0 0.0
    %250 = vmatpush1.msra.mxu0 0.0
    %251 = vmatprep.subr.mxu0 0.0
    %252 = vmatpush1.msra.mxu0 0.0
    %253 = vmatprep.subr.mxu0 0.0
    %254 = vmatpush1.msra.mxu0 0.0
    %255 = vmatprep.subr.mxu0 0.0
    %256 = vmatpush1.msra.mxu0 0.0
    %257 = vmatprep.subr.mxu0 0.0
    %258 = vmatpush1.msra.mxu0 0.0
    %259 = vmatprep.subr.mxu0 0.0
    %260 = vmatpush1.msra.mxu0 0.0
    %261 = vmatprep.subr.mxu0 0.0
    %262 = vmatpush1.msra.mxu0 0.0
    %263 = vmatprep.subr.mxu0 0.0
    %264 = vmatpush1.msra.mxu0 0.0
    %265 = vmatprep.subr.mxu0 0.0
    %266 = vmatpush1.msra.mxu0 0.0
    %267 = vmatprep.subr.mxu0 0.0
    %268 = vmatpush1.msra.mxu0 0.0
    %269 = vmatprep.subr.mxu0 0.0
    %270 = vmatpush1.msra.mxu0 0.0
    %271 = vmatprep.subr.mxu0 0.0
    %272 = vmatpush1.msra.mxu0 0.0
    %273 = vmatprep.mubr.f32.mxu0 0.0
    %274 = vmatmul.mubr.f32.gmra.mrb[0].mxu0 %v185
    %v275 = vpop.f32.mrb[0].mxu0
    %v276 = vadd.f32 %v207, %v275
    %v277 = vpop.f32.mrb[0].mxu0
    %278 = vdwg.mxu0
    %279 = vst [vmem:[#allocation10] sm:$0xff] %v276
    %v280 = vld [vmem:[#allocation7] sm:$0xff]
    %v281 = vld [vmem:[#allocation7 + $0x8] sm:$0xff]
    %v282 = vld [vmem:[#allocation7 + $0x10] sm:$0xff]
    %v283 = vld [vmem:[#allocation7 + $0x18] sm:$0xff]
    %v284 = vld [vmem:[#allocation7 + $0x20] sm:$0xff]
    %v285 = vld [vmem:[#allocation7 + $0x28] sm:$0xff]
    %v286 = vld [vmem:[#allocation7 + $0x30] sm:$0xff]
    %v287 = vld [vmem:[#allocation7 + $0x38] sm:$0xff]
    %v288 = vld [vmem:[#allocation7 + $0x40] sm:$0xff]
    %v289 = vld [vmem:[#allocation7 + $0x48] sm:$0xff]
    %v290 = vld [vmem:[#allocation7 + $0x50] sm:$0xff]
    %v291 = vld [vmem:[#allocation7 + $0x58] sm:$0xff]
    %v292 = vld [vmem:[#allocation7 + $0x60] sm:$0xff]
    %v293 = vld [vmem:[#allocation7 + $0x68] sm:$0xff]
    %v294 = vld [vmem:[#allocation7 + $0x70] sm:$0xff]
    %v295 = vld [vmem:[#allocation7 + $0x78] sm:$0xff]
    %v296 = vld [vmem:[%s6] sm:$0x1]
    %v298 = vlaneseq
    %v299 = vshrl.u32 %v298, 7
    %v300 = vsub.s32 0, %v299
    %v301 = vrot.slane %v296, %v300
    %303 = vmatprep.subr.mxu0 0.0
    %304 = vmatpush1.msra.mxu0 %v280
    %305 = vmatprep.subr.mxu0 0.0
    %306 = vmatpush1.msra.mxu0 %v281
    %307 = vmatprep.subr.mxu0 0.0
    %308 = vmatpush1.msra.mxu0 %v282
    %309 = vmatprep.subr.mxu0 0.0
    %310 = vmatpush1.msra.mxu0 %v283
    %311 = vmatprep.subr.mxu0 0.0
    %312 = vmatpush1.msra.mxu0 %v284
    %313 = vmatprep.subr.mxu0 0.0
    %314 = vmatpush1.msra.mxu0 %v285
    %315 = vmatprep.subr.mxu0 0.0
    %316 = vmatpush1.msra.mxu0 %v286
    %317 = vmatprep.subr.mxu0 0.0
    %318 = vmatpush1.msra.mxu0 %v287
    %319 = vmatprep.subr.mxu0 0.0
    %320 = vmatpush1.msra.mxu0 %v288
    %321 = vmatprep.subr.mxu0 0.0
    %322 = vmatpush1.msra.mxu0 %v289
    %323 = vmatprep.subr.mxu0 0.0
    %324 = vmatpush1.msra.mxu0 %v290
    %325 = vmatprep.subr.mxu0 0.0
    %326 = vmatpush1.msra.mxu0 %v291
    %327 = vmatprep.subr.mxu0 0.0
    %328 = vmatpush1.msra.mxu0 %v292
    %329 = vmatprep.subr.mxu0 0.0
    %330 = vmatpush1.msra.mxu0 %v293
    %331 = vmatprep.subr.mxu0 0.0
    %332 = vmatpush1.msra.mxu0 %v294
    %333 = vmatprep.subr.mxu0 0.0
    %334 = vmatpush1.msra.mxu0 %v295
    %335 = vmatprep.subr.mxu0 0.0
    %336 = vmatpush1.msra.mxu0 0.0
    %337 = vmatprep.subr.mxu0 0.0
    %338 = vmatpush1.msra.mxu0 0.0
    %339 = vmatprep.subr.mxu0 0.0
    %340 = vmatpush1.msra.mxu0 0.0
    %341 = vmatprep.subr.mxu0 0.0
    %342 = vmatpush1.msra.mxu0 0.0
    %343 = vmatprep.subr.mxu0 0.0
    %344 = vmatpush1.msra.mxu0 0.0
    %345 = vmatprep.subr.mxu0 0.0
    %346 = vmatpush1.msra.mxu0 0.0
    %347 = vmatprep.subr.mxu0 0.0
    %348 = vmatpush1.msra.mxu0 0.0
    %349 = vmatprep.subr.mxu0 0.0
    %350 = vmatpush1.msra.mxu0 0.0
    %351 = vmatprep.subr.mxu0 0.0
    %352 = vmatpush1.msra.mxu0 0.0
    %353 = vmatprep.subr.mxu0 0.0
    %354 = vmatpush1.msra.mxu0 0.0
    %355 = vmatprep.subr.mxu0 0.0
    %356 = vmatpush1.msra.mxu0 0.0
    %357 = vmatprep.subr.mxu0 0.0
    %358 = vmatpush1.msra.mxu0 0.0
    %359 = vmatprep.subr.mxu0 0.0
    %360 = vmatpush1.msra.mxu0 0.0
    %361 = vmatprep.subr.mxu0 0.0
    %362 = vmatpush1.msra.mxu0 0.0
    %363 = vmatprep.subr.mxu0 0.0
    %364 = vmatpush1.msra.mxu0 0.0
    %365 = vmatprep.subr.mxu0 0.0
    %366 = vmatpush1.msra.mxu0 0.0
    %367 = vmatprep.mubr.f32.mxu0 0.0
    %368 = vmatmul.mubr.f32.gmra.mrb[0].mxu0 %v276
    %v369 = vpop.f32.mrb[0].mxu0
    %v370 = vadd.f32 %v301, %v369
    %v371 = vpop.f32.mrb[0].mxu0
    %372 = vdwg.mxu0
    %v373 = vmax.f32 %v370, 0.0
    %v374 = vld [vmem:[#allocation8] sm:$0xff]
    %v375 = vld [vmem:[#allocation8 + $0x8] sm:$0xff]
    %v376 = vld [vmem:[#allocation8 + $0x10] sm:$0xff]
    %v377 = vld [vmem:[#allocation8 + $0x18] sm:$0xff]
    %v378 = vld [vmem:[#allocation8 + $0x20] sm:$0xff]
    %v379 = vld [vmem:[#allocation8 + $0x28] sm:$0xff]
    %v380 = vld [vmem:[#allocation8 + $0x30] sm:$0xff]
    %v381 = vld [vmem:[#allocation8 + $0x38] sm:$0xff]
    %v382 = vld [vmem:[#allocation8 + $0x40] sm:$0xff]
    %v383 = vld [vmem:[#allocation8 + $0x48] sm:$0xff]
    %v384 = vld [vmem:[#allocation8 + $0x50] sm:$0xff]
    %v385 = vld [vmem:[#allocation8 + $0x58] sm:$0xff]
    %v386 = vld [vmem:[#allocation8 + $0x60] sm:$0xff]
    %v387 = vld [vmem:[#allocation8 + $0x68] sm:$0xff]
    %v388 = vld [vmem:[#allocation8 + $0x70] sm:$0xff]
    %v389 = vld [vmem:[#allocation8 + $0x78] sm:$0xff]
    %v390 = vld [vmem:[%s8] sm:$0x1]
    %v392 = vlaneseq
    %v393 = vshrl.u32 %v392, 7
    %v394 = vsub.s32 0, %v393
    %v395 = vrot.slane %v390, %v394
    %397 = vmatprep.subr.mxu0 0.0
    %398 = vmatpush1.msra.mxu0 %v374
    %399 = vmatprep.subr.mxu0 0.0
    %400 = vmatpush1.msra.mxu0 %v375
    %401 = vmatprep.subr.mxu0 0.0
    %402 = vmatpush1.msra.mxu0 %v376
    %403 = vmatprep.subr.mxu0 0.0
    %404 = vmatpush1.msra.mxu0 %v377
    %405 = vmatprep.subr.mxu0 0.0
    %406 = vmatpush1.msra.mxu0 %v378
    %407 = vmatprep.subr.mxu0 0.0
    %408 = vmatpush1.msra.mxu0 %v379
    %409 = vmatprep.subr.mxu0 0.0
    %410 = vmatpush1.msra.mxu0 %v380
    %411 = vmatprep.subr.mxu0 0.0
    %412 = vmatpush1.msra.mxu0 %v381
    %413 = vmatprep.subr.mxu0 0.0
    %414 = vmatpush1.msra.mxu0 %v382
    %415 = vmatprep.subr.mxu0 0.0
    %416 = vmatpush1.msra.mxu0 %v383
    %417 = vmatprep.subr.mxu0 0.0
    %418 = vmatpush1.msra.mxu0 %v384
    %419 = vmatprep.subr.mxu0 0.0
    %420 = vmatpush1.msra.mxu0 %v385
    %421 = vmatprep.subr.mxu0 0.0
    %422 = vmatpush1.msra.mxu0 %v386
    %423 = vmatprep.subr.mxu0 0.0
    %424 = vmatpush1.msra.mxu0 %v387
    %425 = vmatprep.subr.mxu0 0.0
    %426 = vmatpush1.msra.mxu0 %v388
    %427 = vmatprep.subr.mxu0 0.0
    %428 = vmatpush1.msra.mxu0 %v389
    %429 = vmatprep.subr.mxu0 0.0
    %430 = vmatpush1.msra.mxu0 0.0
    %431 = vmatprep.subr.mxu0 0.0
    %432 = vmatpush1.msra.mxu0 0.0
    %433 = vmatprep.subr.mxu0 0.0
    %434 = vmatpush1.msra.mxu0 0.0
    %435 = vmatprep.subr.mxu0 0.0
    %436 = vmatpush1.msra.mxu0 0.0
    %437 = vmatprep.subr.mxu0 0.0
    %438 = vmatpush1.msra.mxu0 0.0
    %439 = vmatprep.subr.mxu0 0.0
    %440 = vmatpush1.msra.mxu0 0.0
    %441 = vmatprep.subr.mxu0 0.0
    %442 = vmatpush1.msra.mxu0 0.0
    %443 = vmatprep.subr.mxu0 0.0
    %444 = vmatpush1.msra.mxu0 0.0
    %445 = vmatprep.subr.mxu0 0.0
    %446 = vmatpush1.msra.mxu0 0.0
    %447 = vmatprep.subr.mxu0 0.0
    %448 = vmatpush1.msra.mxu0 0.0
    %449 = vmatprep.subr.mxu0 0.0
    %450 = vmatpush1.msra.mxu0 0.0
    %451 = vmatprep.subr.mxu0 0.0
    %452 = vmatpush1.msra.mxu0 0.0
    %453 = vmatprep.subr.mxu0 0.0
    %454 = vmatpush1.msra.mxu0 0.0
    %455 = vmatprep.subr.mxu0 0.0
    %456 = vmatpush1.msra.mxu0 0.0
    %457 = vmatprep.subr.mxu0 0.0
    %458 = vmatpush1.msra.mxu0 0.0
    %459 = vmatprep.subr.mxu0 0.0
    %460 = vmatpush1.msra.mxu0 0.0
    %461 = vmatprep.mubr.f32.mxu0 0.0
    %462 = vmatmul.mubr.f32.gmra.mrb[0].mxu0 %v373
    %v463 = vpop.f32.mrb[0].mxu0
    %v464 = vadd.f32 %v395, %v463
    %v465 = vpop.f32.mrb[0].mxu0
    %466 = vdwg.mxu0
    %467 = vst [vmem:[#allocation11] sm:$0xff] %v464
    // Predicated region
    $region54: #{slownet_forward.1} parent=1 // pred_check
      _
    $region55: #{slownet_forward.1} parent=1 // pred_check_branch
      %469 = sbr.rel (0) target = $region57
    $region56: #{slownet_forward.1} parent=1 // pred_region
      %s471 = ssub.s32 128, 128
      %472 = vsyncadd [#allocation4], %s471
      %s474 = sshll.u32 [#allocation10], 4
      %s475 = int_to_ptr.vmem [resolvable:$true] %s474
      %477 = dma.vmem_to_hbm [thread:$0]  %s475, 128, %s9, [#allocation4]
    $region57: #{slownet_forward.1} parent=1 // pred_fallthru
      _
    // Predicated region
    $region58: #{slownet_forward.1} parent=1 // pred_check
      _
    $region59: #{slownet_forward.1} parent=1 // pred_check_branch
      %479 = sbr.rel (0) target = $region61
    $region60: #{slownet_forward.1} parent=1 // pred_region
      %s481 = ssub.s32 128, 128
      %482 = vsyncadd [#allocation12], %s481
      %s484 = sshll.u32 [#allocation11], 4
      %s485 = int_to_ptr.vmem [resolvable:$true] %s484
      %487 = dma.vmem_to_hbm [thread:$0]  %s485, 128, %s10, [#allocation12]
    $region61: #{slownet_forward.1} parent=1 // pred_fallthru
      _
    // Predicated region
    $region62: #{slownet_forward.1} parent=1 // pred_check
      _
    $region63: #{slownet_forward.1} parent=1 // pred_check_branch
      %489 = sbr.rel (0) target = $region65
    $region64: #{slownet_forward.1} parent=1 // pred_region
      %490 = dma.done [#allocation4], 128
    $region65: #{slownet_forward.1} parent=1 // pred_fallthru
      _
    // Predicated region
    $region66: #{slownet_forward.1} parent=1 // pred_check
      _
    $region67: #{slownet_forward.1} parent=1 // pred_check_branch
      %492 = sbr.rel (0) target = $region69
    $region68: #{slownet_forward.1} parent=1 // pred_region
      %493 = dma.done [#allocation12], 128
    $region69: #{slownet_forward.1} parent=1 // pred_fallthru
      _
    %494 = vsyncpa [#allocation3], 1
    %495 = vsyncpa [#allocation6], 1
    %496 = vsyncpa [#allocation9], 1
    %497 = vsyncpa [#allocation4], 1
    %498 = vsyncpa [#allocation12], 1

</llo_original>
